<compile_context>
chip_gen: v5e
topology: v5e:2x2
jax: 0.10.0
libtpu: 0.0.40
codegen_flags: <defaults>
</compile_context>

<pallas_src>
import jax
import jax.numpy as jnp
from jax.experimental import pallas as pl
from jax.experimental.pallas import tpu as pltpu


def _round_up(x, m):
    return ((x + m - 1) // m) * m


def adapter_kernel(x_ref, w1_ref, b1_ref, w2_ref, b2_ref, o_ref):
    x = x_ref[...]                                                  # (tm, dim)
    # Full-rate MXU path: both operands in the weight dtype, f32 accumulation.
    x_mxu = x.astype(w1_ref.dtype)
    h = jnp.dot(x_mxu, w1_ref[...], preferred_element_type=jnp.float32) + b1_ref[...]
    h = jnp.tanh(h)                                                 # EUP, f32
    h = h.astype(w2_ref.dtype)
    y = jnp.dot(h, w2_ref[...], preferred_element_type=jnp.float32) + b2_ref[...]
    # Residual in f32, single cast at the end.
    o_ref[...] = (y + x.astype(jnp.float32)).astype(o_ref.dtype)


def prepare_adapter_params(w_down, b_down, w_up, b_up, *, lane=128):
    """One-time (parameter-load-time) conversion from the PyTorch nn.Linear
    convention -- w_down:(down_dim, dim), w_up:(dim, down_dim) -- to the
    kernel layout: transposed to (in, out).  Only the hidden dimension is
    zero-padded (to a multiple of `lane`); the activation dimension `dim` is
    left untouched so x / out HBM traffic is not inflated.  Zero padding is
    exact: padded hidden lanes are tanh(0)=0 and multiply zero rows of W2.
    On v6e/v7x you may set lane=256 (full MXU width) once the kernel is no
    longer purely HBM-bound."""
    down_dim, dim = w_down.shape
    down_p = _round_up(down_dim, lane)

    w1 = jnp.zeros((dim, down_p), w_down.dtype).at[:, :down_dim].set(w_down.T)
    b1 = jnp.zeros((1, down_p), jnp.float32).at[0, :down_dim].set(
        b_down.astype(jnp.float32))
    w2 = jnp.zeros((down_p, dim), w_up.dtype).at[:down_dim, :].set(w_up.T)
    b2 = b_up.astype(jnp.float32).reshape(1, dim)
    return w1, b1, w2, b2


def _pick_vmem_limit():
    """~48 MiB on v7x-class chips (64 MiB physical per TC), 64 MiB on
    v5e/v6e (128 MiB physical)."""
    try:
        cap = pltpu.get_tpu_info().vmem_capacity_bytes
    except Exception:
        cap = 64 * 1024 * 1024  # conservative fallback
    if cap <= 64 * 1024 * 1024:
        return 48 * 1024 * 1024
    return 64 * 1024 * 1024


def adapter_forward(x, w1, b1, w2, b2, *, tm=4096, down_dim=None):
    """x: (..., dim).  w1:(dim, down_p), b1:(1, down_p), w2:(down_p, dim),
    b2:(1, dim) as produced by prepare_adapter_params.  `tm` is the requested
    row tile (multiple of 128; it is further clamped by a VMEM budget, by the
    megacore >=2-iteration rule and by M).  `down_dim` is the true hidden
    width (for the advisory CostEstimate); defaults to the padded width."""
    orig_shape = x.shape
    dim = orig_shape[-1]
    dim_w, down_p = w1.shape
    assert dim_w == dim and w2.shape == (down_p, dim)
    down_true = down_p if down_dim is None else down_dim

    x2d = x.reshape(-1, dim)                                        # (M, dim)
    M = x2d.shape[0]

    x_itemsize = jnp.dtype(x.dtype).itemsize
    w_itemsize = jnp.dtype(w1.dtype).itemsize
    vmem_limit = _pick_vmem_limit()

    # --- derive the row tile from a VMEM budget (portable to v7x) ---------
    # Per tile row: x + out (each double-buffered by the pipeline) plus f32
    # in-kernel intermediates (h, y, x_f32).
    per_row_bytes = 4 * dim * x_itemsize + 4 * down_p + 12 * dim
    weight_bytes = 2 * dim * down_p * w_itemsize + 4 * (down_p + dim)
    budget = int(0.6 * vmem_limit) - weight_bytes
    tm_budget = max(128, (budget // per_row_bytes) // 128 * 128)

    tm_eff = min(tm, tm_budget)
    # v7x megacore: keep >= 2 grid iterations whenever M allows.
    tm_eff = min(tm_eff, max(128, _round_up(pl.cdiv(M, 2), 128)))
    tm_eff = max(tm_eff, 128)
    # Never allocate a tile (much) bigger than the whole problem; keep the
    # sublane dim a multiple of 8.
    tm_eff = min(tm_eff, _round_up(M, 8))

    grid = (pl.cdiv(M, tm_eff),)   # ragged last block handled by Pallas

    # Advisory cost from the TRUE dims (not the padded ones).
    cost = pl.CostEstimate(
        flops=4 * M * dim * down_true,
        transcendentals=M * down_true,
        bytes_accessed=2 * M * dim * x_itemsize + weight_bytes,
    )

    # Weights/biases never change across the grid -> single resident buffer.
    resident = dict(pipeline_mode=pl.Buffered(buffer_count=1))

    out2d = pl.pallas_call(
        adapter_kernel,
        out_shape=jax.ShapeDtypeStruct((M, dim), x.dtype),
        grid_spec=pltpu.PrefetchScalarGridSpec(
            num_scalar_prefetch=0,
            grid=grid,
            in_specs=[
                pl.BlockSpec((tm_eff, dim), lambda i: (i, 0)),               # x tile
                pl.BlockSpec((dim, down_p), lambda i: (0, 0), **resident),   # W1
                pl.BlockSpec((1, down_p), lambda i: (0, 0), **resident),     # b1
                pl.BlockSpec((down_p, dim), lambda i: (0, 0), **resident),   # W2
                pl.BlockSpec((1, dim), lambda i: (0, 0), **resident),        # b2
            ],
            out_specs=pl.BlockSpec((tm_eff, dim), lambda i: (i, 0)),
        ),
        compiler_params=pltpu.CompilerParams(
            dimension_semantics=("parallel",),
            vmem_limit_bytes=vmem_limit,
        ),
        cost_estimate=cost,
    )(x2d, w1, b1, w2, b2)

    return out2d.reshape(orig_shape)


def reference_forward(x, w_down, b_down, w_up, b_up):
    h = jnp.tanh(x @ w_down.T + b_down)
    return h @ w_up.T + b_up + x


if __name__ == "__main__":
    # Small shapes consistent with the module: dim=32, down_dim=16,
    # x of shape (batch=2, seq=8, dim=32).
    dim, down_dim = 32, 16
    batch, seq = 2, 8

    key = jax.random.PRNGKey(0)
    kx, kw1, kb1, kw2, kb2, kx2 = jax.random.split(key, 6)

    x = jax.random.normal(kx, (batch, seq, dim), dtype=jnp.float32)
    # PyTorch nn.Linear convention: weight is (out_features, in_features).
    w_down = jax.random.normal(kw1, (down_dim, dim), dtype=jnp.float32) * 0.1
    b_down = jax.random.normal(kb1, (down_dim,), dtype=jnp.float32) * 0.1
    w_up = jax.random.normal(kw2, (dim, down_dim), dtype=jnp.float32) * 0.1
    b_up = jax.random.normal(kb2, (dim,), dtype=jnp.float32) * 0.1

    # One-time parameter preparation (outside the per-call hot path).
    params = prepare_adapter_params(w_down, b_down, w_up, b_up)

    out = adapter_forward(x, *params, down_dim=down_dim)
    out = jax.block_until_ready(out)
    ref = reference_forward(x, w_down, b_down, w_up, b_up)
    assert out.shape == x.shape
    assert jnp.allclose(out, ref, atol=1e-5, rtol=1e-5), "mismatch vs reference"

    # Second check: exercises a multi-step grid with a ragged last row block
    # (M = 300 rows, row tile 256 -> grid=(2,), last block partially masked).
    x2 = jax.random.normal(kx2, (2, 150, dim), dtype=jnp.float32)
    out2 = jax.block_until_ready(adapter_forward(x2, *params, down_dim=down_dim))
    ref2 = reference_forward(x2, w_down, b_down, w_up, b_up)
    assert out2.shape == x2.shape
    assert jnp.allclose(out2, ref2, atol=1e-5, rtol=1e-5), "ragged-grid mismatch"

    print("KERNEL_OK")
</pallas_src>

<mosaic_0001>
module attributes {stable_mosaic.version = 11 : i64} {
  func.func @adapter_kernel(%arg0: i32, %arg1: memref<16x32xf32, #tpu.memory_space<vmem>>, %arg2: memref<32x128xf32, #tpu.memory_space<vmem>>, %arg3: memref<1x128xf32, #tpu.memory_space<vmem>>, %arg4: memref<128x32xf32, #tpu.memory_space<vmem>>, %arg5: memref<1x32xf32, #tpu.memory_space<vmem>>, %arg6: memref<16x32xf32, #tpu.memory_space<vmem>>) attributes {dimension_semantics = [#tpu.dimension_semantics<parallel>], iteration_bounds = array<i64: 1>, scalar_prefetch = 0 : i64, scratch_operands = 0 : i64, tpu.core_type = #tpu.core_type<tc>, window_params = [{transform_indices = @transform_0, window_bounds = array<i64: 16, 32>}, {pipeline_mode = #tpu.pipeline_mode<synchronous>, transform_indices = @transform_1, window_bounds = array<i64: 32, 128>}, {pipeline_mode = #tpu.pipeline_mode<synchronous>, transform_indices = @transform_2, window_bounds = array<i64: 1, 128>}, {pipeline_mode = #tpu.pipeline_mode<synchronous>, transform_indices = @transform_3, window_bounds = array<i64: 128, 32>}, {pipeline_mode = #tpu.pipeline_mode<synchronous>, transform_indices = @transform_4, window_bounds = array<i64: 1, 32>}, {transform_indices = @transform_5, window_bounds = array<i64: 16, 32>}]} {
    %c0 = arith.constant 0 : index
    %c0_0 = arith.constant 0 : index
    %0 = vector.load %arg1[%c0, %c0_0] : memref<16x32xf32, #tpu.memory_space<vmem>>, vector<16x32xf32>
    %c0_1 = arith.constant 0 : index
    %c0_2 = arith.constant 0 : index
    %1 = vector.load %arg2[%c0_1, %c0_2] : memref<32x128xf32, #tpu.memory_space<vmem>>, vector<32x128xf32>
    %cst = arith.constant dense<0.000000e+00> : vector<16x128xf32>
    %2 = tpu.matmul %0, %1, %cst {dimension_numbers = #tpu.dot_dimension_numbers<[1], [0], [0], [1], [0, 0, 1, 1], [], []>} : vector<16x32xf32>, vector<32x128xf32>, vector<16x128xf32> -> vector<16x128xf32>
    %c0_3 = arith.constant 0 : index
    %c0_4 = arith.constant 0 : index
    %3 = vector.load %arg3[%c0_3, %c0_4] : memref<1x128xf32, #tpu.memory_space<vmem>>, vector<1x128xf32>
    %4 = vector.broadcast %3 : vector<1x128xf32> to vector<16x128xf32>
    %5 = arith.addf %2, %4 : vector<16x128xf32>
    %6 = math.tanh %5 : vector<16x128xf32>
    %c0_5 = arith.constant 0 : index
    %c0_6 = arith.constant 0 : index
    %7 = vector.load %arg4[%c0_5, %c0_6] : memref<128x32xf32, #tpu.memory_space<vmem>>, vector<128x32xf32>
    %cst_7 = arith.constant dense<0.000000e+00> : vector<16x32xf32>
    %8 = tpu.matmul %6, %7, %cst_7 {dimension_numbers = #tpu.dot_dimension_numbers<[1], [0], [0], [1], [0, 0, 1, 1], [], []>} : vector<16x128xf32>, vector<128x32xf32>, vector<16x32xf32> -> vector<16x32xf32>
    %c0_8 = arith.constant 0 : index
    %c0_9 = arith.constant 0 : index
    %9 = vector.load %arg5[%c0_8, %c0_9] : memref<1x32xf32, #tpu.memory_space<vmem>>, vector<1x32xf32>
    %10 = vector.broadcast %9 : vector<1x32xf32> to vector<16x32xf32>
    %11 = arith.addf %8, %10 : vector<16x32xf32>
    %12 = arith.addf %11, %0 : vector<16x32xf32>
    %c0_10 = arith.constant 0 : index
    %c0_11 = arith.constant 0 : index
    %13 = vector.load %arg6[%c0_10, %c0_11] : memref<16x32xf32, #tpu.memory_space<vmem>>, vector<16x32xf32>
    tpu.vector_store %arg6[%c0_10, %c0_11], %12 {strides = array<i32>} : memref<16x32xf32, #tpu.memory_space<vmem>>, vector<16x32xf32>,
    return
  }
  func.func @transform_0(%arg0: i32) -> (i32, i32) {
    %c0_i32 = arith.constant 0 : i32
    %c0_i32_0 = arith.constant 0 : i32
    return %arg0, %c0_i32 : i32, i32
  }
  func.func @transform_1(%arg0: i32) -> (i32, i32) {
    %c0_i32 = arith.constant 0 : i32
    %c0_i32_0 = arith.constant 0 : i32
    %c0_i32_1 = arith.constant 0 : i32
    return %c0_i32, %c0_i32_0 : i32, i32
  }
  func.func @transform_2(%arg0: i32) -> (i32, i32) {
    %c0_i32 = arith.constant 0 : i32
    %c0_i32_0 = arith.constant 0 : i32
    %c0_i32_1 = arith.constant 0 : i32
    return %c0_i32, %c0_i32_0 : i32, i32
  }
  func.func @transform_3(%arg0: i32) -> (i32, i32) {
    %c0_i32 = arith.constant 0 : i32
    %c0_i32_0 = arith.constant 0 : i32
    %c0_i32_1 = arith.constant 0 : i32
    return %c0_i32, %c0_i32_0 : i32, i32
  }
  func.func @transform_4(%arg0: i32) -> (i32, i32) {
    %c0_i32 = arith.constant 0 : i32
    %c0_i32_0 = arith.constant 0 : i32
    %c0_i32_1 = arith.constant 0 : i32
    return %c0_i32, %c0_i32_0 : i32, i32
  }
  func.func @transform_5(%arg0: i32) -> (i32, i32) {
    %c0_i32 = arith.constant 0 : i32
    %c0_i32_0 = arith.constant 0 : i32
    return %arg0, %c0_i32 : i32, i32
  }
}

</mosaic_0001>

<llo_original>
// kernel: tpu_custom_call.1
$region0: #{tpu_custom_call.1}
  #allocation0 [shape = 'u32[]', space=smem, size = 0x4, offset = 0x4, fixed_abs, tag = 'smem constant byte address 0x4 - core index']
  #allocation1 [shape = 'u32[72,128]{1,0:T(1,128)}', space=vmem, size = 0x9000, scoped, tag = 'internal scratch']
  %s0 = inlined_call_operand.vmem [shape: f32[16,32], index: 0, kind: input, shape index: {}]
  %s1 = inlined_call_operand.vmem [shape: f32[32,128], index: 1, kind: input, shape index: {}]
  %s2 = inlined_call_operand.vmem [shape: f32[1,128], index: 2, kind: input, shape index: {}]
  %s3 = inlined_call_operand.vmem [shape: f32[128,32], index: 3, kind: input, shape index: {}]
  %s4 = inlined_call_operand.vmem [shape: f32[1,32], index: 4, kind: input, shape index: {}]
  %s5 = inlined_call_operand.hbm [shape: f32[16,32], index: 5, kind: output, shape index: {}]
  %s6 = sld [smem:[#allocation0]]
  $region30: #{tpu_custom_call.1} parent=0
    _
  %s8 = ssub.s32 1, %s6
  %s9 = scalar_select 0, %s8, %s6
  $region1: #{tpu_custom_call.1} parent=0
    #allocation2 [shape = 'u8[8192]{0}', space=vmem, size = 0x2000, scoped, tag = 'output window, operand 0, single buffered']
    #allocation3 [shape = 's32[1]{0}', space=sflag, size = 0x4, scoped, tag = 'scoped memory for tpu_custom_call.1']
    %10 = vsyncpa [#allocation3], 0
    // Predicated region
    $region2: #{tpu_custom_call.1} parent=1 // pred_check
      _
    $region3: #{tpu_custom_call.1} parent=1 // pred_check_branch
      %12 = sbr.rel (0) target = $region5
    $region4: #{tpu_custom_call.1} parent=1 // pred_region
      _
    $region5: #{tpu_custom_call.1} parent=1 // pred_fallthru
      _
    // Predicated region
    $region6: #{tpu_custom_call.1} parent=1 // pred_check
      _
    $region7: #{tpu_custom_call.1} parent=1 // pred_check_branch
      %14 = sbr.rel (0) target = $region9
    $region8: #{tpu_custom_call.1} parent=1 // pred_region
      _
    $region9: #{tpu_custom_call.1} parent=1 // pred_fallthru
      _
    // Predicated region
    $region10: #{tpu_custom_call.1} parent=1 // pred_check
      _
    $region11: #{tpu_custom_call.1} parent=1 // pred_check_branch
      %16 = sbr.rel (0) target = $region13
    $region12: #{tpu_custom_call.1} parent=1 // pred_region
      _
    $region13: #{tpu_custom_call.1} parent=1 // pred_fallthru
      _
    // Predicated region
    $region14: #{tpu_custom_call.1} parent=1 // pred_check
      _
    $region15: #{tpu_custom_call.1} parent=1 // pred_check_branch
      %18 = sbr.rel (0) target = $region17
    $region16: #{tpu_custom_call.1} parent=1 // pred_region
      _
    $region17: #{tpu_custom_call.1} parent=1 // pred_fallthru
      _
    // Predicated region
    $region18: #{tpu_custom_call.1} parent=1 // pred_check
      _
    $region19: #{tpu_custom_call.1} parent=1 // pred_check_branch
      %20 = sbr.rel (0) target = $region21
    $region20: #{tpu_custom_call.1} parent=1 // pred_region
      _
    $region21: #{tpu_custom_call.1} parent=1 // pred_fallthru
      _
    %v21 = vld [vmem:[%s0] sm:$0xff]
    %v22 = vld [vmem:[%s0 + $0x8] sm:$0xff]
    %v23 = vld [vmem:[%s1] sm:$0xff]
    %v24 = vld [vmem:[%s1 + $0x8] sm:$0xff]
    %v25 = vld [vmem:[%s1 + $0x10] sm:$0xff]
    %v26 = vld [vmem:[%s1 + $0x18] sm:$0xff]
    %v27 = vld [vmem:[%s2] sm:$0x1]
    %v29 = vperm.slane %v27, 0
    %vm31 = vcmask 261120
    %v33 = vsel %vm31, %v21, 0
    %v36 = vsel %vm31, %v22, 0
    %38 = vmatpush.msra.mxu0 0.0
    %39 = vmatpush.msra.mxu0 0.0
    %40 = vmatpush.msra.mxu0 0.0
    %41 = vmatpush.msra.mxu0 0.0
    %42 = vmatpush.msra.mxu0 0.0
    %43 = vmatpush.msra.mxu0 0.0
    %44 = vmatpush.msra.mxu0 0.0
    %45 = vmatpush.msra.mxu0 0.0
    %46 = vmatpush.msra.mxu0 0.0
    %47 = vmatpush.msra.mxu0 0.0
    %48 = vmatpush.msra.mxu0 0.0
    %49 = vmatpush.msra.mxu0 0.0
    %50 = vmatpush.msra.mxu0 %v26
    %51 = vmatpush.msra.mxu0 %v25
    %52 = vmatpush.msra.mxu0 %v24
    %53 = vmatpush.msra.mxu0 %v23
    %54 = vmatmul.f32.gmra.mxu0 %v33
    %v55 = vpop.f32.mrf.mxu0
    %v56 = vadd.f32 %v29, %v55
    %57 = vmatmul.f32.gmra.mxu0 %v36
    %v58 = vpop.f32.mrf.mxu0
    %v59 = vadd.f32 %v29, %v58
    %60 = vdwg.mxu0
    %v61 = vtanh.pop %v56
    %v62 = vtanh.pop %v59
    %v63 = vld [vmem:[%s3] sm:$0xff]
    %v64 = vld [vmem:[%s3 + $0x8] sm:$0xff]
    %v65 = vld [vmem:[%s3 + $0x10] sm:$0xff]
    %v66 = vld [vmem:[%s3 + $0x18] sm:$0xff]
    %v67 = vld [vmem:[%s3 + $0x20] sm:$0xff]
    %v68 = vld [vmem:[%s3 + $0x28] sm:$0xff]
    %v69 = vld [vmem:[%s3 + $0x30] sm:$0xff]
    %v70 = vld [vmem:[%s3 + $0x38] sm:$0xff]
    %v71 = vld [vmem:[%s3 + $0x40] sm:$0xff]
    %v72 = vld [vmem:[%s3 + $0x48] sm:$0xff]
    %v73 = vld [vmem:[%s3 + $0x50] sm:$0xff]
    %v74 = vld [vmem:[%s3 + $0x58] sm:$0xff]
    %v75 = vld [vmem:[%s3 + $0x60] sm:$0xff]
    %v76 = vld [vmem:[%s3 + $0x68] sm:$0xff]
    %v77 = vld [vmem:[%s3 + $0x70] sm:$0xff]
    %v78 = vld [vmem:[%s3 + $0x78] sm:$0xff]
    %v79 = vld [vmem:[%s4] sm:$0x1]
    %v81 = vperm.slane %v79, 0
    %83 = vmatpush.msra.mxu0 %v78
    %84 = vmatpush.msra.mxu0 %v77
    %85 = vmatpush.msra.mxu0 %v76
    %86 = vmatpush.msra.mxu0 %v75
    %87 = vmatpush.msra.mxu0 %v74
    %88 = vmatpush.msra.mxu0 %v73
    %89 = vmatpush.msra.mxu0 %v72
    %90 = vmatpush.msra.mxu0 %v71
    %91 = vmatpush.msra.mxu0 %v70
    %92 = vmatpush.msra.mxu0 %v69
    %93 = vmatpush.msra.mxu0 %v68
    %94 = vmatpush.msra.mxu0 %v67
    %95 = vmatpush.msra.mxu0 %v66
    %96 = vmatpush.msra.mxu0 %v65
    %97 = vmatpush.msra.mxu0 %v64
    %98 = vmatpush.msra.mxu0 %v63
    %99 = vmatmul.f32.gmra.mxu0 %v61
    %v100 = vpop.f32.mrf.mxu0
    %v101 = vadd.f32 %v81, %v100
    %102 = vmatmul.f32.gmra.mxu0 %v62
    %v103 = vpop.f32.mrf.mxu0
    %v104 = vadd.f32 %v81, %v103
    %105 = vdwg.mxu0
    %v106 = vadd.f32 %v101, %v21
    %v107 = vadd.f32 %v104, %v22
    %108 = vst.msk [vmem:[#allocation2] sm:$0xff] %vm31, %v106
    %109 = vst.msk [vmem:[#allocation2 + $0x8] sm:$0xff] %vm31, %v107
    // Predicated region
    $region22: #{tpu_custom_call.1} parent=1 // pred_check
      _
    $region23: #{tpu_custom_call.1} parent=1 // pred_check_branch
      %111 = sbr.rel (0) target = $region25
    $region24: #{tpu_custom_call.1} parent=1 // pred_region
      %113 = vsyncadd [#allocation3], 0
      %s114 = sshll.u32 [#allocation2], 4
      %s115 = int_to_ptr.vmem [resolvable:$true] %s114
      %s116 = sshll.u32 %s5, 4
      %s117 = int_to_ptr.hbm [resolvable:$true] %s116
      %122 = dma.vmem_to_hbm [thread:$0]  %s115, 256, %s117, [#allocation3], 128, 128, 8
    $region25: #{tpu_custom_call.1} parent=1 // pred_fallthru
      _
    // Predicated region
    $region26: #{tpu_custom_call.1} parent=1 // pred_check
      _
    $region27: #{tpu_custom_call.1} parent=1 // pred_check_branch
      %124 = sbr.rel (0) target = $region29
    $region28: #{tpu_custom_call.1} parent=1 // pred_region
      %126 = dma.done [#allocation3], 256
    $region29: #{tpu_custom_call.1} parent=1 // pred_fallthru
      _
    %127 = vsyncpa [#allocation3], 1

</llo_original>
